<compile_context>
chip_gen: v7x
topology: tpu7x:2x2x1
jax: 0.10.0
libtpu: 0.0.40
codegen_flags: <defaults>
</compile_context>

<pallas_src>
import math

import jax
import jax.numpy as jnp
from jax import lax
from jax.experimental import pallas as pl
from jax.experimental.pallas import tpu as pltpu

_VMEM = pl.BlockSpec(memory_space=pltpu.MemorySpace.VMEM)


def _pick_tile(n, target=512):
    """Largest row tile that divides n and satisfies the (8,128) block rule."""
    if n <= target:
        return n
    for d in range(target, 7, -1):
        if d % 8 == 0 and n % d == 0:
            return d
    return n  # fallback: one tile per batch row-range (block == full dim, still legal)


# ----------------------------------------------------------------------------
# Kernel A: tap-decomposed Conv1d row-tile + per-tile BN partial statistics.
#   grid = (B, n_tiles), both parallel.  Input tile carries a (taps-1)-row halo.
# ----------------------------------------------------------------------------
def make_conv_stats(B, L, n_tiles, tile, taps, kin, cout):
    tw = tile + taps - 1

    def kernel(win_ref, w_ref, y_ref, st_ref):
        # win_ref: (1, 1, tile+taps-1, kin)   w_ref: (taps, kin, cout)
        # y_ref  : (1, tile, cout)            st_ref: (1, 1, 2, cout)
        acc = jnp.dot(win_ref[0, 0, pl.ds(0, tile), :], w_ref[0],
                      preferred_element_type=jnp.float32)
        for k in range(1, taps):
            acc += jnp.dot(win_ref[0, 0, pl.ds(k, tile), :], w_ref[k],
                           preferred_element_type=jnp.float32)
        # Conv bias intentionally dropped: batch-stat BN cancels it exactly.
        y_ref[0] = acc
        s1 = jnp.sum(acc, axis=0, keepdims=True)
        s2 = jnp.sum(acc * acc, axis=0, keepdims=True)
        st_ref[0, 0] = jnp.concatenate([s1, s2], axis=0)

    def call(windows, w_taps):
        return pl.pallas_call(
            kernel,
            grid=(B, n_tiles),
            in_specs=[
                pl.BlockSpec((1, 1, tw, kin), lambda b, t: (b, t, 0, 0)),
                pl.BlockSpec((taps, kin, cout), lambda b, t: (0, 0, 0)),
            ],
            out_specs=(
                pl.BlockSpec((1, tile, cout), lambda b, t: (b, t, 0)),
                pl.BlockSpec((1, 1, 2, cout), lambda b, t: (b, t, 0, 0)),
            ),
            out_shape=(
                jax.ShapeDtypeStruct((B, L, cout), jnp.float32),
                jax.ShapeDtypeStruct((B, n_tiles, 2, cout), jnp.float32),
            ),
            compiler_params=pltpu.CompilerParams(
                dimension_semantics=("parallel", "parallel")),
        )(windows, w_taps)

    return call


def conv_block(x_seq, w_taps, gamma, beta, B, L, taps, kin, cout, eps):
    """x_seq: (B, L+taps-1, kin) halo-extended sequence -> (raw conv out, bn scale, shift)."""
    tile = _pick_tile(L)
    n_tiles = L // tile
    # Per-tile windows with a (taps-1)-row halo (negligible duplication vs. full im2col).
    windows = jnp.stack(
        [lax.slice_in_dim(x_seq, t * tile, t * tile + tile + taps - 1, axis=1)
         for t in range(n_tiles)], axis=1)                    # (B, n_tiles, tile+taps-1, kin)
    y_raw, st = make_conv_stats(B, L, n_tiles, tile, taps, kin, cout)(windows, w_taps)
    s = jnp.sum(st, axis=(0, 1))                              # (2, cout)
    n = float(B * L)
    mean = s[0] / n
    var = jnp.maximum(s[1] / n - mean * mean, 0.0)            # biased (training-mode BN)
    scale = gamma * lax.rsqrt(var + eps)
    shift = beta - mean * scale
    return y_raw, scale, shift


# ----------------------------------------------------------------------------
# Kernel B: 2-layer LSTM (single invocation, software-pipelined layers, hoisted
#           layer-1 input projection, partial unroll) + Linear + Sigmoid.
# ----------------------------------------------------------------------------
def make_lstm_fc(Lp, B, C, H, O):
    G = 4 * H
    unroll = int(min(max(Lp - 1, 1), 8))

    def kernel(x_ref, wih1_ref, whh1_ref, b1_ref,
               wih2_ref, whh2_ref, b2_ref, wf_ref, bf_ref,
               o_ref, gx1_ref, c1_ref, h1_ref, c2_ref, h2_ref):
        # x_ref: (Lp*B, C) pooled activations, rows time-major (t*B + b)
        # hoisted layer-1 input projection (one well-shaped matmul)
        gx1_ref[...] = jnp.dot(x_ref[...], wih1_ref[...],
                               preferred_element_type=jnp.float32) + b1_ref[...]

        def cell(gates, c_prev):
            i_g = jax.nn.sigmoid(gates[:, 0:H])
            f_g = jax.nn.sigmoid(gates[:, H:2 * H])
            g_g = jnp.tanh(gates[:, 2 * H:3 * H])
            o_g = jax.nn.sigmoid(gates[:, 3 * H:4 * H])
            c_new = f_g * c_prev + i_g * g_g
            return o_g * jnp.tanh(c_new), c_new

        def l1_step(t, h1_old):
            g1 = gx1_ref[pl.ds(t * B, B), :] + jnp.dot(
                h1_old, whh1_ref[...], preferred_element_type=jnp.float32)
            h1_new, c1_new = cell(g1, c1_ref[...])
            c1_ref[...] = c1_new
            h1_ref[...] = h1_new

        def l2_step(h1_in):
            g2 = (jnp.dot(h1_in, wih2_ref[...], preferred_element_type=jnp.float32)
                  + b2_ref[...]
                  + jnp.dot(h2_ref[...], whh2_ref[...],
                            preferred_element_type=jnp.float32))
            h2_new, c2_new = cell(g2, c2_ref[...])
            c2_ref[...] = c2_new
            h2_ref[...] = h2_new

        zeros = jnp.zeros((B, H), jnp.float32)
        c1_ref[...] = zeros
        c2_ref[...] = zeros
        h2_ref[...] = zeros
        l1_step(0, zeros)                          # prologue: layer-1 step 0

        def body(t, carry):
            h1_old = h1_ref[...]                   # layer-1 hidden at step t-1
            l1_step(t, h1_old)                     # layer-1 step t
            l2_step(h1_old)                        # layer-2 step t-1 (pipelined)
            return carry

        lax.fori_loop(1, Lp, body, 0, unroll=unroll)
        l2_step(h1_ref[...])                       # epilogue: layer-2 step Lp-1

        o_ref[...] = jax.nn.sigmoid(
            jnp.dot(h2_ref[...], wf_ref[...], preferred_element_type=jnp.float32)
            + bf_ref[...])

    def call(pooled_tm, wih1, whh1, b1, wih2, whh2, b2, wf, bf):
        return pl.pallas_call(
            kernel,
            out_shape=jax.ShapeDtypeStruct((B, O), jnp.float32),
            in_specs=[_VMEM] * 9,
            out_specs=_VMEM,
            scratch_shapes=[pltpu.VMEM((Lp * B, G), jnp.float32),   # hoisted layer-1 gates
                            pltpu.VMEM((B, H), jnp.float32),        # c1
                            pltpu.VMEM((B, H), jnp.float32),        # h1
                            pltpu.VMEM((B, H), jnp.float32),        # c2
                            pltpu.VMEM((B, H), jnp.float32)],       # h2
            compiler_params=pltpu.CompilerParams(
                vmem_limit_bytes=48 * 1024 * 1024),
        )(pooled_tm, wih1, whh1, b1, wih2, whh2, b2, wf, bf)

    return call


# ----------------------------------------------------------------------------
# Full forward (elementwise / layout glue in plain XLA, hot paths in Pallas)
# ----------------------------------------------------------------------------
def custom_raw4_forward(x, params, hidden=128, outputs=1, eps=1e-5):
    B, Cin, W = x.shape
    assert Cin == 1, "CustomRaw4 expects single-channel raw-audio input"
    Cout = params['conv1_w'].shape[0]                       # 128
    K1, S1 = params['conv1_w'].shape[2], 256                # 512, 256
    L1 = (W - K1) // S1 + 1
    assert L1 >= 3, "input too short for MaxPool1d(3,3)"

    # ---- conv block 1: Conv1d(1->128, k=512, s=256) as 2 taps over 256-blocks ----
    xs = x[:, 0, :(L1 + 1) * S1].reshape(B, L1 + 1, S1)     # non-overlapping 256-blocks
    w1_taps = jnp.transpose(params['conv1_w'][:, 0, :], (1, 0)).reshape(2, S1, Cout)
    y1_raw, scale1, shift1 = conv_block(xs, w1_taps, params['bn1_g'], params['bn1_b'],
                                        B, L1, 2, S1, Cout, eps)
    # BN1 + ReLU + zero-pad fused by XLA into one elementwise/pad pass.
    y1 = jnp.maximum(y1_raw * scale1[None, None, :] + shift1[None, None, :], 0.0)
    y1p = jnp.pad(y1, ((0, 0), (1, 1), (0, 0)))             # (B, L1+2, 128)

    # ---- conv block 2: Conv1d(128->128, k=3, s=1, p=1) as 3 taps over channels ----
    w2_taps = jnp.transpose(params['conv2_w'], (2, 1, 0))   # (3, Cin, Cout)
    y2_raw, scale2, shift2 = conv_block(y1p, w2_taps, params['bn2_g'], params['bn2_b'],
                                        B, L1, 3, Cout, Cout, eps)

    # ---- BN2 + ReLU + MaxPool1d(3,3): cheap elementwise/strided-slice XLA glue ----
    y2 = jnp.maximum(y2_raw * scale2[None, None, :] + shift2[None, None, :], 0.0)
    Lp = (L1 - 3) // 3 + 1
    pooled = jnp.maximum(jnp.maximum(y2[:, 0:3 * Lp:3, :], y2[:, 1:3 * Lp:3, :]),
                         y2[:, 2:3 * Lp:3, :])              # (B, Lp, 128)
    pooled_tm = jnp.transpose(pooled, (1, 0, 2)).reshape(Lp * B, Cout)  # time-major rows
    # TODO(synk): nn.Dropout(p=0.05) treated as identity (no stochastic masking).

    # ---- 2-layer LSTM + Linear + Sigmoid, single kernel invocation ----
    H, O = hidden, outputs
    out = make_lstm_fc(Lp, B, Cout, H, O)(
        pooled_tm,
        jnp.transpose(params['lstm_wih_l0'], (1, 0)),
        jnp.transpose(params['lstm_whh_l0'], (1, 0)),
        (params['lstm_bih_l0'] + params['lstm_bhh_l0'])[None, :],
        jnp.transpose(params['lstm_wih_l1'], (1, 0)),
        jnp.transpose(params['lstm_whh_l1'], (1, 0)),
        (params['lstm_bih_l1'] + params['lstm_bhh_l1'])[None, :],
        jnp.transpose(params['fc_w'], (1, 0)),
        params['fc_b'][None, :])
    return out                                              # (B, outputs)


# ----------------------------------------------------------------------------
# Pure-JAX reference (independent formulation: lax.conv + scan) for validation
# ----------------------------------------------------------------------------
def _bn_relu_ncw(y, gamma, beta, eps):
    mean = jnp.mean(y, axis=(0, 2), keepdims=True)
    var = jnp.mean((y - mean) ** 2, axis=(0, 2), keepdims=True)
    yn = (y - mean) * jax.lax.rsqrt(var + eps)
    return jnp.maximum(yn * gamma[None, :, None] + beta[None, :, None], 0.0)


def reference_forward(x, p, eps=1e-5):
    hp = jax.lax.Precision.HIGHEST
    with jax.default_matmul_precision("highest"):
        y = jax.lax.conv_general_dilated(
            x, p['conv1_w'], window_strides=(256,), padding='VALID',
            dimension_numbers=('NCH', 'OIH', 'NCH'), precision=hp)
        y = _bn_relu_ncw(y + p['conv1_b'][None, :, None], p['bn1_g'], p['bn1_b'], eps)
        y = jax.lax.conv_general_dilated(
            y, p['conv2_w'], window_strides=(1,), padding=[(1, 1)],
            dimension_numbers=('NCH', 'OIH', 'NCH'), precision=hp)
        y = _bn_relu_ncw(y + p['conv2_b'][None, :, None], p['bn2_g'], p['bn2_b'], eps)
        Bn, C, L = y.shape
        Lp = (L - 3) // 3 + 1
        pooled = jnp.max(jnp.stack([y[:, :, j::3][:, :, :Lp] for j in range(3)], 0), 0)
        seq = jnp.transpose(pooled, (0, 2, 1))               # (B, Lp, C)

        def lstm_layer(seq_blc, wih, whh, bih, bhh):
            H = whh.shape[1]

            def step(carry, x_t):
                h, c = carry
                g = x_t @ wih.T + bih + h @ whh.T + bhh
                i = jax.nn.sigmoid(g[:, 0:H])
                f = jax.nn.sigmoid(g[:, H:2 * H])
                gg = jnp.tanh(g[:, 2 * H:3 * H])
                o = jax.nn.sigmoid(g[:, 3 * H:4 * H])
                c = f * c + i * gg
                h = o * jnp.tanh(c)
                return (h, c), h

            z = jnp.zeros((seq_blc.shape[0], H), jnp.float32)
            _, hs = jax.lax.scan(step, (z, z), jnp.swapaxes(seq_blc, 0, 1))
            return jnp.swapaxes(hs, 0, 1)

        h1 = lstm_layer(seq, p['lstm_wih_l0'], p['lstm_whh_l0'],
                        p['lstm_bih_l0'], p['lstm_bhh_l0'])
        h2 = lstm_layer(h1, p['lstm_wih_l1'], p['lstm_whh_l1'],
                        p['lstm_bih_l1'], p['lstm_bhh_l1'])
        return jax.nn.sigmoid(h2[:, -1, :] @ p['fc_w'].T + p['fc_b'])


if __name__ == "__main__":
    # Conv1d(k=512, s=256) + MaxPool(3,3) force W >= 1024; keep it as small as is sensible.
    B, Cin, W = 2, 1, 2560          # -> L1 = 9, pooled length Lp = 3
    H, O = 128, 1

    key = jax.random.PRNGKey(0)
    ks = jax.random.split(key, 14)

    def u(k, shape, bound):
        return jax.random.uniform(k, shape, jnp.float32, -bound, bound)

    he = lambda n: math.sqrt(2.0 / n) * math.sqrt(3.0)
    lb = 1.0 / math.sqrt(H)
    params = dict(
        conv1_w=u(ks[0], (128, 1, 512), he(512)),
        conv1_b=jnp.zeros((128,), jnp.float32),
        bn1_g=jnp.ones((128,), jnp.float32),
        bn1_b=jnp.zeros((128,), jnp.float32),
        conv2_w=u(ks[1], (128, 128, 3), he(128 * 3)),
        conv2_b=jnp.zeros((128,), jnp.float32),
        bn2_g=jnp.ones((128,), jnp.float32),
        bn2_b=jnp.zeros((128,), jnp.float32),
        lstm_wih_l0=u(ks[2], (4 * H, 128), lb),
        lstm_whh_l0=u(ks[3], (4 * H, H), lb),
        lstm_bih_l0=u(ks[4], (4 * H,), lb),
        lstm_bhh_l0=u(ks[5], (4 * H,), lb),
        lstm_wih_l1=u(ks[6], (4 * H, H), lb),
        lstm_whh_l1=u(ks[7], (4 * H, H), lb),
        lstm_bih_l1=u(ks[8], (4 * H,), lb),
        lstm_bhh_l1=u(ks[9], (4 * H,), lb),
        fc_w=u(ks[10], (O, H), he(H)),
        fc_b=jnp.zeros((O,), jnp.float32),
    )

    net_input = jax.random.normal(ks[11], (B, Cin, W), jnp.float32)

    out = custom_raw4_forward(net_input, params, hidden=H, outputs=O)
    out = jax.block_until_ready(out)
    assert out.shape == (B, O)
    assert bool(jnp.all(jnp.isfinite(out)))

    ref = jax.block_until_ready(reference_forward(net_input, params))
    assert bool(jnp.allclose(out, ref, rtol=2e-3, atol=2e-3))
    print("KERNEL_OK")
</pallas_src>

<mosaic_0001>
module attributes {stable_mosaic.version = 11 : i64} {
  func.func @kernel(%arg0: i32, %arg1: i32, %arg2: memref<1x1x10x256xf32, #tpu.memory_space<vmem>>, %arg3: memref<2x256x128xf32, #tpu.memory_space<vmem>>, %arg4: memref<1x9x128xf32, #tpu.memory_space<vmem>>, %arg5: memref<1x1x2x128xf32, #tpu.memory_space<vmem>>) attributes {dimension_semantics = [#tpu.dimension_semantics<parallel>, #tpu.dimension_semantics<parallel>], iteration_bounds = array<i64: 2, 1>, scalar_prefetch = 0 : i64, scratch_operands = 0 : i64, tpu.core_type = #tpu.core_type<tc>, window_params = [{transform_indices = @transform_0, window_bounds = array<i64: 1, 1, 10, 256>}, {pipeline_mode = #tpu.pipeline_mode<synchronous>, transform_indices = @transform_1, window_bounds = array<i64: 2, 256, 128>}, {transform_indices = @transform_2, window_bounds = array<i64: 1, 9, 128>}, {transform_indices = @transform_3, window_bounds = array<i64: 1, 1, 2, 128>}]} {
    %c0 = arith.constant 0 : index
    %c0_0 = arith.constant 0 : index
    %c0_1 = arith.constant 0 : index
    %c0_2 = arith.constant 0 : index
    %0 = vector.load %arg2[%c0, %c0_0, %c0_1, %c0_2] : memref<1x1x10x256xf32, #tpu.memory_space<vmem>>, vector<1x1x9x256xf32>
    %1 = vector.shape_cast %0 : vector<1x1x9x256xf32> to vector<9x256xf32>
    %c0_3 = arith.constant 0 : index
    %c0_4 = arith.constant 0 : index
    %c0_5 = arith.constant 0 : index
    %2 = vector.load %arg3[%c0_3, %c0_4, %c0_5] : memref<2x256x128xf32, #tpu.memory_space<vmem>>, vector<1x256x128xf32>
    %3 = vector.shape_cast %2 : vector<1x256x128xf32> to vector<256x128xf32>
    %cst = arith.constant dense<0.000000e+00> : vector<9x128xf32>
    %4 = tpu.matmul %1, %3, %cst {dimension_numbers = #tpu.dot_dimension_numbers<[1], [0], [0], [1], [0, 0, 1, 1], [], []>} : vector<9x256xf32>, vector<256x128xf32>, vector<9x128xf32> -> vector<9x128xf32>
    %c0_6 = arith.constant 0 : index
    %c0_7 = arith.constant 0 : index
    %c1 = arith.constant 1 : index
    %c0_8 = arith.constant 0 : index
    %5 = vector.load %arg2[%c0_6, %c0_7, %c1, %c0_8] : memref<1x1x10x256xf32, #tpu.memory_space<vmem>>, vector<1x1x9x256xf32>
    %6 = vector.shape_cast %5 : vector<1x1x9x256xf32> to vector<9x256xf32>
    %c1_9 = arith.constant 1 : index
    %c0_10 = arith.constant 0 : index
    %c0_11 = arith.constant 0 : index
    %7 = vector.load %arg3[%c1_9, %c0_10, %c0_11] : memref<2x256x128xf32, #tpu.memory_space<vmem>>, vector<1x256x128xf32>
    %8 = vector.shape_cast %7 : vector<1x256x128xf32> to vector<256x128xf32>
    %cst_12 = arith.constant dense<0.000000e+00> : vector<9x128xf32>
    %9 = tpu.matmul %6, %8, %cst_12 {dimension_numbers = #tpu.dot_dimension_numbers<[1], [0], [0], [1], [0, 0, 1, 1], [], []>} : vector<9x256xf32>, vector<256x128xf32>, vector<9x128xf32> -> vector<9x128xf32>
    %10 = arith.addf %4, %9 : vector<9x128xf32>
    %c0_13 = arith.constant 0 : index
    %c0_14 = arith.constant 0 : index
    %c0_15 = arith.constant 0 : index
    %11 = vector.load %arg4[%c0_13, %c0_14, %c0_15] : memref<1x9x128xf32, #tpu.memory_space<vmem>>, vector<1x9x128xf32>
    %12 = vector.shape_cast %11 : vector<1x9x128xf32> to vector<9x128xf32>
    %13 = vector.shape_cast %10 : vector<9x128xf32> to vector<1x9x128xf32>
    tpu.vector_store %arg4[%c0_13, %c0_14, %c0_15], %13 {strides = array<i32>} : memref<1x9x128xf32, #tpu.memory_space<vmem>>, vector<1x9x128xf32>,
    %cst_16 = arith.constant dense<0.000000e+00> : vector<128xf32>
    %14 = vector.multi_reduction <add>, %10, %cst_16 [0] : vector<9x128xf32> to vector<128xf32>
    %15 = vector.shape_cast %14 : vector<128xf32> to vector<1x128xf32>
    %16 = arith.mulf %10, %10 : vector<9x128xf32>
    %cst_17 = arith.constant dense<0.000000e+00> : vector<128xf32>
    %17 = vector.multi_reduction <add>, %16, %cst_17 [0] : vector<9x128xf32> to vector<128xf32>
    %18 = vector.shape_cast %17 : vector<128xf32> to vector<1x128xf32>
    %19 = tpu.concatenate %15, %18 in 0 : vector<1x128xf32>, vector<1x128xf32> -> vector<2x128xf32>
    %c0_18 = arith.constant 0 : index
    %c0_19 = arith.constant 0 : index
    %c0_20 = arith.constant 0 : index
    %c0_21 = arith.constant 0 : index
    %20 = vector.load %arg5[%c0_18, %c0_19, %c0_20, %c0_21] : memref<1x1x2x128xf32, #tpu.memory_space<vmem>>, vector<1x1x2x128xf32>
    %21 = vector.shape_cast %20 : vector<1x1x2x128xf32> to vector<2x128xf32>
    %22 = vector.shape_cast %19 : vector<2x128xf32> to vector<1x1x2x128xf32>
    tpu.vector_store %arg5[%c0_18, %c0_19, %c0_20, %c0_21], %22 {strides = array<i32>} : memref<1x1x2x128xf32, #tpu.memory_space<vmem>>, vector<1x1x2x128xf32>,
    return
  }
  func.func @transform_0(%arg0: i32, %arg1: i32) -> (i32, i32, i32, i32) {
    %c0_i32 = arith.constant 0 : i32
    %c0_i32_0 = arith.constant 0 : i32
    %c0_i32_1 = arith.constant 0 : i32
    return %arg0, %arg1, %c0_i32, %c0_i32_0 : i32, i32, i32, i32
  }
  func.func @transform_1(%arg0: i32, %arg1: i32) -> (i32, i32, i32) {
    %c0_i32 = arith.constant 0 : i32
    %c0_i32_0 = arith.constant 0 : i32
    %c0_i32_1 = arith.constant 0 : i32
    %c0_i32_2 = arith.constant 0 : i32
    return %c0_i32, %c0_i32_0, %c0_i32_1 : i32, i32, i32
  }
  func.func @transform_2(%arg0: i32, %arg1: i32) -> (i32, i32, i32) {
    %c0_i32 = arith.constant 0 : i32
    %c0_i32_0 = arith.constant 0 : i32
    return %arg0, %arg1, %c0_i32 : i32, i32, i32
  }
  func.func @transform_3(%arg0: i32, %arg1: i32) -> (i32, i32, i32, i32) {
    %c0_i32 = arith.constant 0 : i32
    %c0_i32_0 = arith.constant 0 : i32
    %c0_i32_1 = arith.constant 0 : i32
    return %arg0, %arg1, %c0_i32, %c0_i32_0 : i32, i32, i32, i32
  }
}

</mosaic_0001>

<llo_original>
// kernel: tpu_custom_call.1
$region0: #{tpu_custom_call.1}
  #allocation0 [shape = 'u32[]', space=smem, size = 0x4, offset = 0x4, fixed_abs, tag = 'smem constant byte address 0x4 - core index']
  #allocation1 [shape = 'u32[144,128]{1,0:T(1,128)}', space=vmem, size = 0x12000, scoped, tag = 'internal scratch']
  %s0 = inlined_call_operand.vmem [shape: f32[2,1,10,256], index: 0, kind: input, shape index: {}]
  %s1 = inlined_call_operand.hbm [shape: f32[2,256,128], index: 1, kind: input, shape index: {}]
  %s2 = inlined_call_operand.vmem [shape: f32[2,9,128], index: 2, kind: output, shape index: {0}]
  %s3 = inlined_call_operand.hbm [shape: f32[2,1,2,128], index: 3, kind: output, shape index: {1}]
  %4 = xla_tuple %s2, %s3
  %s5 = sld [smem:[#allocation0]]
  $region53: #{tpu_custom_call.1} parent=0
    _
  %s7 = ssub.s32 1, %s5
  %s8 = scalar_select 0, %s7, %s5
  $region1: #{tpu_custom_call.1} parent=0
    #allocation2 [shape = 'u8[262144]{0}', space=vmem, size = 0x40000, scoped, tag = 'input window, operand 1, single buffered']
    #allocation3 [shape = 's32[2]{0}', space=sflag, size = 0x8, scoped, tag = 'scoped memory for tpu_custom_call.1']
    #allocation4 [shape = 's32[2]{0}', space=sflag, size = 0x8, scoped, tag = 'scoped memory for tpu_custom_call.1']
    #allocation5 [shape = 'u8[2048]{0}', space=vmem, size = 0x800, scoped, tag = 'output window, operand 1']
    %9 = vsyncpa [#allocation3], 0
    %10 = vsyncpa [#allocation4], 0
    %s11 = scalar_lea.sflag [#allocation4], 1
    %12 = vsyncpa %s11, 0
    loop: start=0, step=1, limit=4
    $region2: #{tpu_custom_call.1} parent=1 // loop_pre_header
      _
    $region3: #{tpu_custom_call.1} parent=1 // loop_header
      %s14 = sphi 0, %s18
      %p15 = scmp.ge.s32.totalorder %s14, 4
      %s21 = sphi 0, %s33
      %s22 = sphi 0, %s29
      %s23 = sphi 0, %s21
      %s24 = sphi 0, %s22
      %s25 = sphi 0, %s23
      %s26 = sphi 0, %s24
      %s38 = sphi 0, %s40
      %s41 = sphi 0, %s38
      %s42 = sphi 0, %s41
      %s58 = sphi 0, %s42
      %s62 = sphi 0, %s62
      %s64 = sphi 0, %s62
      %s65 = sphi 0, %s64
      %s79 = sphi 0, %s65
      %s87 = sphi 0, %s89
      %s90 = sphi 0, %s87
      %s91 = sphi 0, %s90
      %s107 = sphi 0, %s91
      %s115 = sphi 0, %s117
      %s118 = sphi 0, %s115
      %s119 = sphi 0, %s118
      %s135 = sphi 0, %s119
    $region4: #{tpu_custom_call.1} parent=1 // loop_header_branch
      %17 = sbr.rel (%p15) target = $region8
    $region5: #{tpu_custom_call.1} parent=1 // loop_body
      %s19 = ssub.s32 %s14, 1
      %s20 = ssub.s32 %s14, 2
      %s27 = sadd.s32 1, %s22
      %p28 = scmp.ge.s32.totalorder %s27, 1
      %s29 = scalar_select %p28, 0, %s27
      %s30 = sadd.s32 1, %s21
      %s31 = scalar_select %p28, %s30, %s21
      %p32 = scmp.ge.s32.totalorder %s31, 2
      %s33 = scalar_select %p32, 0, %s31
      %s34 = ssub.s32 %s21, %s33
      %s35 = ssub.s32 %s22, %s29
      %s36 = sor.u32 %s34, %s35
      %p37 = scmp.eq.s32.totalorder %s36, 0
      %s39 = sadd.s32 %s38, 1
      %s40 = scalar_select %p37, %s38, %s39
      %p43 = pneg %p37
      %p44 = scmp.eq.s32.totalorder %s14, 1
      %p45 = por %p43, %p44
      %p46 = scmp.ne.s32.totalorder %s38, %s41
      %p47 = scmp.eq.s32.totalorder %s14, 0
      %p48 = por %p46, %p47
      %p49 = scmp.ne.s32.totalorder %s38, %s41
      %p50 = scmp.eq.s32.totalorder %s19, 1
      %p51 = por %p49, %p50
      %p52 = scmp.ne.s32.totalorder %s41, %s42
      %p53 = scmp.eq.s32.totalorder %s19, 0
      %p54 = por %p52, %p53
      %p55 = scmp.ne.s32.totalorder %s41, %s42
      %p56 = scmp.eq.s32.totalorder %s20, 1
      %p57 = por %p55, %p56
      %p59 = scmp.ne.s32.totalorder %s42, %s58
      %p60 = scmp.eq.s32.totalorder %s20, 0
      %p61 = por %p59, %p60
      %s63 = sadd.s32 %s62, 1
      %p66 = scmp.eq.s32.totalorder %s14, 1
      %p67 = scmp.ne.s32.totalorder %s62, %s64
      %p68 = scmp.eq.s32.totalorder %s14, 0
      %p69 = por %p67, %p68
      %p70 = scmp.ne.s32.totalorder %s62, %s64
      %p71 = scmp.eq.s32.totalorder %s19, 1
      %p72 = por %p70, %p71
      %p73 = scmp.ne.s32.totalorder %s64, %s65
      %p74 = scmp.eq.s32.totalorder %s19, 0
      %p75 = por %p73, %p74
      %p76 = scmp.ne.s32.totalorder %s64, %s65
      %p77 = scmp.eq.s32.totalorder %s20, 1
      %p78 = por %p76, %p77
      %p80 = scmp.ne.s32.totalorder %s65, %s79
      %p81 = scmp.eq.s32.totalorder %s20, 0
      %p82 = por %p80, %p81
      %s83 = ssub.s32 %s21, %s33
      %s84 = ssub.s32 %s22, %s29
      %s85 = sor.u32 %s83, %s84
      %p86 = scmp.eq.s32.totalorder %s85, 0
      %s88 = sadd.s32 %s87, 1
      %s89 = scalar_select %p86, %s87, %s88
      %p92 = pneg %p86
      %p93 = scmp.eq.s32.totalorder %s14, 1
      %p94 = por %p92, %p93
      %p95 = scmp.ne.s32.totalorder %s87, %s90
      %p96 = scmp.eq.s32.totalorder %s14, 0
      %p97 = por %p95, %p96
      %p98 = scmp.ne.s32.totalorder %s87, %s90
      %p99 = scmp.eq.s32.totalorder %s19, 1
      %p100 = por %p98, %p99
      %p101 = scmp.ne.s32.totalorder %s90, %s91
      %p102 = scmp.eq.s32.totalorder %s19, 0
      %p103 = por %p101, %p102
      %p104 = scmp.ne.s32.totalorder %s90, %s91
      %p105 = scmp.eq.s32.totalorder %s20, 1
      %p106 = por %p104, %p105
      %p108 = scmp.ne.s32.totalorder %s91, %s107
      %p109 = scmp.eq.s32.totalorder %s20, 0
      %p110 = por %p108, %p109
      %s111 = ssub.s32 %s21, %s33
      %s112 = ssub.s32 %s22, %s29
      %s113 = sor.u32 %s111, %s112
      %p114 = scmp.eq.s32.totalorder %s113, 0
      %s116 = sadd.s32 %s115, 1
      %s117 = scalar_select %p114, %s115, %s116
      %p120 = pneg %p114
      %p121 = scmp.eq.s32.totalorder %s14, 1
      %p122 = por %p120, %p121
      %p123 = scmp.ne.s32.totalorder %s115, %s118
      %p124 = scmp.eq.s32.totalorder %s14, 0
      %p125 = por %p123, %p124
      %p126 = scmp.ne.s32.totalorder %s115, %s118
      %p127 = scmp.eq.s32.totalorder %s19, 1
      %p128 = por %p126, %p127
      %p129 = scmp.ne.s32.totalorder %s118, %s119
      %p130 = scmp.eq.s32.totalorder %s19, 0
      %p131 = por %p129, %p130
      %p132 = scmp.ne.s32.totalorder %s118, %s119
      %p133 = scmp.eq.s32.totalorder %s20, 1
      %p134 = por %p132, %p133
      %p136 = scmp.ne.s32.totalorder %s119, %s135
      %p137 = scmp.eq.s32.totalorder %s20, 0
      %p138 = por %p136, %p137
      %p139 = scmp.le.s32.totalorder 1, %s14
      %p140 = scmp.lt.s32.totalorder %s14, 3
      %p141 = pnand %p139, %p140
      %p142 = pneg %p141
      // Predicated region
      $region9: #{tpu_custom_call.1} parent=5 // pred_check
        _
      $region10: #{tpu_custom_call.1} parent=5 // pred_check_branch
        %144 = sbr.rel (%p141) target = $region12
      $region11: #{tpu_custom_call.1} parent=5 // pred_region
        %s145 = ssub.s32 %s14, 1
        // Predicated region
        $region13: #{tpu_custom_call.1} parent=11 // pred_check
          %p146 = pneg %p75
        $region14: #{tpu_custom_call.1} parent=11 // pred_check_branch
          %148 = sbr.rel (%p146) target = $region16
        $region15: #{tpu_custom_call.1} parent=11 // pred_region
          %s150 = ssub.s32 8192, 8192
          %151 = vsyncadd [#allocation3], %s150
          %s152 = sshll.u32 [#allocation2], 4
          %s153 = int_to_ptr.vmem [resolvable:$true] %s152
          %158 = dma.hbm_to_vmem [thread:$0]  %s1, 8192, %s153, [#allocation3], 128, 128, 8
        $region16: #{tpu_custom_call.1} parent=11 // pred_fallthru
          _
      $region12: #{tpu_custom_call.1} parent=5 // pred_fallthru
        _
      %p159 = scmp.lt.s32.totalorder %s14, 2
      // Predicated region
      $region17: #{tpu_custom_call.1} parent=5 // pred_check
        %p160 = pneg %p159
      $region18: #{tpu_custom_call.1} parent=5 // pred_check_branch
        %162 = sbr.rel (%p160) target = $region20
      $region19: #{tpu_custom_call.1} parent=5 // pred_region
        // Predicated region
        $region21: #{tpu_custom_call.1} parent=19 // pred_check
          %p163 = pneg %p48
        $region22: #{tpu_custom_call.1} parent=19 // pred_check_branch
          %165 = sbr.rel (%p163) target = $region24
        $region23: #{tpu_custom_call.1} parent=19 // pred_region
          %p166 = scmp.lt.s32.totalorder %s21, 1
          %s167 = scalar_select %p166, %s21, 1
          %p168 = scmp.lt.s32.totalorder %s22, 0
          %s169 = scalar_select %p168, %s22, 0
          %s170 = smul.addr %s169, 4
          %s171 = smul.addr %s167, 4
          %s172 = sadd.s32 %s170, %s171
          %s173 = smul.addr %s172, 8
          %s174 = scalar_lea.vmem %s0, %s173
        $region24: #{tpu_custom_call.1} parent=19 // pred_fallthru
          _
      $region20: #{tpu_custom_call.1} parent=5 // pred_fallthru
        _
      %p175 = scmp.le.s32.totalorder 1, %s14
      %p176 = scmp.lt.s32.totalorder %s14, 3
      %p177 = pnand %p175, %p176
      %p178 = pneg %p177
      // Predicated region
      $region25: #{tpu_custom_call.1} parent=5 // pred_check
        _
      $region26: #{tpu_custom_call.1} parent=5 // pred_check_branch
        %180 = sbr.rel (%p177) target = $region28
      $region27: #{tpu_custom_call.1} parent=5 // pred_region
        %s181 = ssub.s32 %s14, 1
        // Predicated region
        $region29: #{tpu_custom_call.1} parent=27 // pred_check
          %p182 = pneg %p75
        $region30: #{tpu_custom_call.1} parent=27 // pred_check_branch
          %184 = sbr.rel (%p182) target = $region32
        $region31: #{tpu_custom_call.1} parent=27 // pred_region
          %185 = dma.done [#allocation3], 8192
        $region32: #{tpu_custom_call.1} parent=27 // pred_fallthru
          _
        %p186 = scmp.lt.s32.totalorder %s23, 1
        %s187 = scalar_select %p186, %s23, 1
        %p188 = scmp.lt.s32.totalorder %s24, 0
        %s189 = scalar_select %p188, %s24, 0
        %s190 = smul.addr %s189, 4
        %s191 = smul.addr %s187, 4
        %s192 = sadd.s32 %s190, %s191
        %s193 = smul.addr %s192, 8
        %s194 = scalar_lea.vmem %s0, %s193
        %p195 = pneg %p54
        %p196 = pneg %p51
        %p197 = pneg %p75
        %p198 = pneg %p72
        %p199 = pneg %p103
        %p200 = pneg %p100
        %s201 = smul.u32 2, %s24
        %p202 = scmp.lt.s32.totalorder %s23, 1
        %s203 = scalar_select %p202, %s23, 1
        %p204 = scmp.lt.s32.totalorder %s201, 1
        %s205 = scalar_select %p204, %s201, 1
        %s206 = smul.addr %s203, 2
        %s207 = sadd.s32 %s205, %s206
        %s208 = smul.addr %s207, 8
        %s209 = scalar_lea.vmem %s2, %s208
        %p210 = pneg %p131
        %p211 = pneg %p128
        %s212 = sand.u32 %s118, 1
        %s213 = scalar_lea.sflag [#allocation4], %s212
        %s214 = sand.u32 %s118, 1
        %s215 = smul.addr %s214, 2
        %s216 = scalar_lea.vmem [#allocation5], %s215
        %p217 = scmp.lt.s32.totalorder %s23, 1
        %s218 = scalar_select %p217, %s23, 1
        %p219 = scmp.lt.s32.totalorder %s24, 0
        %s220 = scalar_select %p219, %s24, 0
        %s221 = smul.addr %s220, 4
        %s222 = smul.addr %s218, 4
        %s223 = sadd.s32 %s221, %s222
        %s224 = smul.addr %s223, 8
        %s225 = scalar_lea.vmem %s0, %s224
        %s226 = smul.u32 2, %s24
        %p227 = scmp.lt.s32.totalorder %s23, 1
        %s228 = scalar_select %p227, %s23, 1
        %p229 = scmp.lt.s32.totalorder %s226, 1
        %s230 = scalar_select %p229, %s226, 1
        %s231 = smul.addr %s228, 2
        %s232 = sadd.s32 %s230, %s231
        %s233 = smul.addr %s232, 8
        %s234 = scalar_lea.vmem %s2, %s233
        %s235 = smul.u32 2, %s24
        %v236 = vld [vmem:[%s225] sm:$0xff]
        %v237 = vld [vmem:[%s225 + $0x8] sm:$0xff]
        %v238 = vld [vmem:[%s225 + $0x10] sm:$0x1]
        %v239 = vld [vmem:[%s225 + $0x18] sm:$0x1]
        %v240 = vld [vmem:[#allocation2] sm:$0xff]
        %v241 = vld [vmem:[#allocation2 + $0x8] sm:$0xff]
        %v242 = vld [vmem:[#allocation2 + $0x10] sm:$0xff]
        %v243 = vld [vmem:[#allocation2 + $0x18] sm:$0xff]
        %v244 = vld [vmem:[#allocation2 + $0x20] sm:$0xff]
        %v245 = vld [vmem:[#allocation2 + $0x28] sm:$0xff]
        %v246 = vld [vmem:[#allocation2 + $0x30] sm:$0xff]
        %v247 = vld [vmem:[#allocation2 + $0x38] sm:$0xff]
        %v248 = vld [vmem:[#allocation2 + $0x40] sm:$0xff]
        %v249 = vld [vmem:[#allocation2 + $0x48] sm:$0xff]
        %v250 = vld [vmem:[#allocation2 + $0x50] sm:$0xff]
        %v251 = vld [vmem:[#allocation2 + $0x58] sm:$0xff]
        %v252 = vld [vmem:[#allocation2 + $0x60] sm:$0xff]
        %v253 = vld [vmem:[#allocation2 + $0x68] sm:$0xff]
        %v254 = vld [vmem:[#allocation2 + $0x70] sm:$0xff]
        %v255 = vld [vmem:[#allocation2 + $0x78] sm:$0xff]
        %v256 = vld [vmem:[#allocation2 + $0x80] sm:$0xff]
        %v257 = vld [vmem:[#allocation2 + $0x88] sm:$0xff]
        %v258 = vld [vmem:[#allocation2 + $0x90] sm:$0xff]
        %v259 = vld [vmem:[#allocation2 + $0x98] sm:$0xff]
        %v260 = vld [vmem:[#allocation2 + $0xa0] sm:$0xff]
        %v261 = vld [vmem:[#allocation2 + $0xa8] sm:$0xff]
        %v262 = vld [vmem:[#allocation2 + $0xb0] sm:$0xff]
        %v263 = vld [vmem:[#allocation2 + $0xb8] sm:$0xff]
        %v264 = vld [vmem:[#allocation2 + $0xc0] sm:$0xff]
        %v265 = vld [vmem:[#allocation2 + $0xc8] sm:$0xff]
        %v266 = vld [vmem:[#allocation2 + $0xd0] sm:$0xff]
        %v267 = vld [vmem:[#allocation2 + $0xd8] sm:$0xff]
        %v268 = vld [vmem:[#allocation2 + $0xe0] sm:$0xff]
        %v269 = vld [vmem:[#allocation2 + $0xe8] sm:$0xff]
        %v270 = vld [vmem:[#allocation2 + $0xf0] sm:$0xff]
        %v271 = vld [vmem:[#allocation2 + $0xf8] sm:$0xff]
        %v272 = vld [vmem:[%s225] sm:$0xfe]
        %v273 = vld [vmem:[%s225 + $0x8] sm:$0xfe]
        %v274 = vld [vmem:[%s225 + $0x10] sm:$0x3]
        %v275 = vld [vmem:[%s225 + $0x18] sm:$0x3]
        %s276 = scalar_lea.vmem [#allocation2], 256
        %v277 = vld [vmem:[%s276] sm:$0xff]
        %v278 = vld [vmem:[%s276 + $0x8] sm:$0xff]
        %v279 = vld [vmem:[%s276 + $0x10] sm:$0xff]
        %v280 = vld [vmem:[%s276 + $0x18] sm:$0xff]
        %v281 = vld [vmem:[%s276 + $0x20] sm:$0xff]
        %v282 = vld [vmem:[%s276 + $0x28] sm:$0xff]
        %v283 = vld [vmem:[%s276 + $0x30] sm:$0xff]
        %v284 = vld [vmem:[%s276 + $0x38] sm:$0xff]
        %v285 = vld [vmem:[%s276 + $0x40] sm:$0xff]
        %v286 = vld [vmem:[%s276 + $0x48] sm:$0xff]
        %v287 = vld [vmem:[%s276 + $0x50] sm:$0xff]
        %v288 = vld [vmem:[%s276 + $0x58] sm:$0xff]
        %v289 = vld [vmem:[%s276 + $0x60] sm:$0xff]
        %v290 = vld [vmem:[%s276 + $0x68] sm:$0xff]
        %v291 = vld [vmem:[%s276 + $0x70] sm:$0xff]
        %v292 = vld [vmem:[%s276 + $0x78] sm:$0xff]
        %v293 = vld [vmem:[%s276 + $0x80] sm:$0xff]
        %v294 = vld [vmem:[%s276 + $0x88] sm:$0xff]
        %v295 = vld [vmem:[%s276 + $0x90] sm:$0xff]
        %v296 = vld [vmem:[%s276 + $0x98] sm:$0xff]
        %v297 = vld [vmem:[%s276 + $0xa0] sm:$0xff]
        %v298 = vld [vmem:[%s276 + $0xa8] sm:$0xff]
        %v299 = vld [vmem:[%s276 + $0xb0] sm:$0xff]
        %v300 = vld [vmem:[%s276 + $0xb8] sm:$0xff]
        %v301 = vld [vmem:[%s276 + $0xc0] sm:$0xff]
        %v302 = vld [vmem:[%s276 + $0xc8] sm:$0xff]
        %v303 = vld [vmem:[%s276 + $0xd0] sm:$0xff]
        %v304 = vld [vmem:[%s276 + $0xd8] sm:$0xff]
        %v305 = vld [vmem:[%s276 + $0xe0] sm:$0xff]
        %v306 = vld [vmem:[%s276 + $0xe8] sm:$0xff]
        %v307 = vld [vmem:[%s276 + $0xf0] sm:$0xff]
        %v308 = vld [vmem:[%s276 + $0xf8] sm:$0xff]
        %vm313 = vcmask 1046528
        %v314 = vrot.slane %v272, 1
        %v315 = vrot.slane %v274, 1
        %v316 = vsel %vm313, %v314, %v315
        %v317 = vrot.slane %v273, 1
        %v318 = vrot.slane %v275, 1
        %v319 = vsel %vm313, %v317, %v318
        %324 = vmatprep.subr.mxu0 0.0
        %325 = vmatpush1.msra.mxu0 %v277
        %326 = vmatprep.subr.mxu0 0.0
        %327 = vmatpush1.msra.mxu0 %v278
        %328 = vmatprep.subr.mxu0 0.0
        %329 = vmatpush1.msra.mxu0 %v279
        %330 = vmatprep.subr.mxu0 0.0
        %331 = vmatpush1.msra.mxu0 %v280
        %332 = vmatprep.subr.mxu0 0.0
        %333 = vmatpush1.msra.mxu0 %v281
        %334 = vmatprep.subr.mxu0 0.0
        %335 = vmatpush1.msra.mxu0 %v282
        %336 = vmatprep.subr.mxu0 0.0
        %337 = vmatpush1.msra.mxu0 %v283
        %338 = vmatprep.subr.mxu0 0.0
        %339 = vmatpush1.msra.mxu0 %v284
        %340 = vmatprep.subr.mxu0 0.0
        %341 = vmatpush1.msra.mxu0 %v285
        %342 = vmatprep.subr.mxu0 0.0
        %343 = vmatpush1.msra.mxu0 %v286
        %344 = vmatprep.subr.mxu0 0.0
        %345 = vmatpush1.msra.mxu0 %v287
        %346 = vmatprep.subr.mxu0 0.0
        %347 = vmatpush1.msra.mxu0 %v288
        %348 = vmatprep.subr.mxu0 0.0
        %349 = vmatpush1.msra.mxu0 %v289
        %350 = vmatprep.subr.mxu0 0.0
        %351 = vmatpush1.msra.mxu0 %v290
        %352 = vmatprep.subr.mxu0 0.0
        %353 = vmatpush1.msra.mxu0 %v291
        %354 = vmatprep.subr.mxu0 0.0
        %355 = vmatpush1.msra.mxu0 %v292
        %356 = vmatprep.subr.mxu0 0.0
        %357 = vmatpush1.msra.mxu0 %v293
        %358 = vmatprep.subr.mxu0 0.0
        %359 = vmatpush1.msra.mxu0 %v294
        %360 = vmatprep.subr.mxu0 0.0
        %361 = vmatpush1.msra.mxu0 %v295
        %362 = vmatprep.subr.mxu0 0.0
        %363 = vmatpush1.msra.mxu0 %v296
        %364 = vmatprep.subr.mxu0 0.0
        %365 = vmatpush1.msra.mxu0 %v297
        %366 = vmatprep.subr.mxu0 0.0
        %367 = vmatpush1.msra.mxu0 %v298
        %368 = vmatprep.subr.mxu0 0.0
        %369 = vmatpush1.msra.mxu0 %v299
        %370 = vmatprep.subr.mxu0 0.0
        %371 = vmatpush1.msra.mxu0 %v300
        %372 = vmatprep.subr.mxu0 0.0
        %373 = vmatpush1.msra.mxu0 %v301
        %374 = vmatprep.subr.mxu0 0.0
        %375 = vmatpush1.msra.mxu0 %v302
        %376 = vmatprep.subr.mxu0 0.0
        %377 = vmatpush1.msra.mxu0 %v303
        %378 = vmatprep.subr.mxu0 0.0
        %379 = vmatpush1.msra.mxu0 %v304
        %380 = vmatprep.subr.mxu0 0.0
        %381 = vmatpush1.msra.mxu0 %v305
        %382 = vmatprep.subr.mxu0 0.0
        %383 = vmatpush1.msra.mxu0 %v306
        %384 = vmatprep.subr.mxu0 0.0
        %385 = vmatpush1.msra.mxu0 %v307
        %386 = vmatprep.subr.mxu0 0.0
        %387 = vmatpush1.msra.mxu0 %v308
        %388 = vmatprep.mubr.f32.mxu0 %v319
        %389 = vmatmul.mubr.f32.gmra.mrb[0].mxu0 %v316
        %v390 = vpop.f32.mrb[0].mxu0
        %v391 = vadd.f32 0.0, %v390
        %v392 = vpop.f32.mrb[0].mxu0
        %393 = vmatprep.mubr.f32.mxu0 %v318
        %394 = vmatmul.mubr.f32.gmra.mrb[0].mxu0 %v315
        %v395 = vpop.f32.mrb[0].mxu0
        %v396 = vadd.f32 0.0, %v395
        %v397 = vpop.f32.mrb[0].mxu0
        %398 = vdwg.mxu0
        %399 = vmatprep.subr.mxu0 0.0
        %400 = vmatpush1.msra.mxu0 %v240
        %401 = vmatprep.subr.mxu0 0.0
        %402 = vmatpush1.msra.mxu0 %v241
        %403 = vmatprep.subr.mxu0 0.0
        %404 = vmatpush1.msra.mxu0 %v242
        %405 = vmatprep.subr.mxu0 0.0
        %406 = vmatpush1.msra.mxu0 %v243
        %407 = vmatprep.subr.mxu0 0.0
        %408 = vmatpush1.msra.mxu0 %v244
        %409 = vmatprep.subr.mxu0 0.0
        %410 = vmatpush1.msra.mxu0 %v245
        %411 = vmatprep.subr.mxu0 0.0
        %412 = vmatpush1.msra.mxu0 %v246
        %413 = vmatprep.subr.mxu0 0.0
        %414 = vmatpush1.msra.mxu0 %v247
        %415 = vmatprep.subr.mxu0 0.0
        %416 = vmatpush1.msra.mxu0 %v248
        %417 = vmatprep.subr.mxu0 0.0
        %418 = vmatpush1.msra.mxu0 %v249
        %419 = vmatprep.subr.mxu0 0.0
        %420 = vmatpush1.msra.mxu0 %v250
        %421 = vmatprep.subr.mxu0 0.0
        %422 = vmatpush1.msra.mxu0 %v251
        %423 = vmatprep.subr.mxu0 0.0
        %424 = vmatpush1.msra.mxu0 %v252
        %425 = vmatprep.subr.mxu0 0.0
        %426 = vmatpush1.msra.mxu0 %v253
        %427 = vmatprep.subr.mxu0 0.0
        %428 = vmatpush1.msra.mxu0 %v254
        %429 = vmatprep.subr.mxu0 0.0
        %430 = vmatpush1.msra.mxu0 %v255
        %431 = vmatprep.subr.mxu0 0.0
        %432 = vmatpush1.msra.mxu0 %v256
        %433 = vmatprep.subr.mxu0 0.0
        %434 = vmatpush1.msra.mxu0 %v257
        %435 = vmatprep.subr.mxu0 0.0
        %436 = vmatpush1.msra.mxu0 %v258
        %437 = vmatprep.subr.mxu0 0.0
        %438 = vmatpush1.msra.mxu0 %v259
        %439 = vmatprep.subr.mxu0 0.0
        %440 = vmatpush1.msra.mxu0 %v260
        %441 = vmatprep.subr.mxu0 0.0
        %442 = vmatpush1.msra.mxu0 %v261
        %443 = vmatprep.subr.mxu0 0.0
        %444 = vmatpush1.msra.mxu0 %v262
        %445 = vmatprep.subr.mxu0 0.0
        %446 = vmatpush1.msra.mxu0 %v263
        %447 = vmatprep.subr.mxu0 0.0
        %448 = vmatpush1.msra.mxu0 %v264
        %449 = vmatprep.subr.mxu0 0.0
        %450 = vmatpush1.msra.mxu0 %v265
        %451 = vmatprep.subr.mxu0 0.0
        %452 = vmatpush1.msra.mxu0 %v266
        %453 = vmatprep.subr.mxu0 0.0
        %454 = vmatpush1.msra.mxu0 %v267
        %455 = vmatprep.subr.mxu0 0.0
        %456 = vmatpush1.msra.mxu0 %v268
        %457 = vmatprep.subr.mxu0 0.0
        %458 = vmatpush1.msra.mxu0 %v269
        %459 = vmatprep.subr.mxu0 0.0
        %460 = vmatpush1.msra.mxu0 %v270
        %461 = vmatprep.subr.mxu0 0.0
        %462 = vmatpush1.msra.mxu0 %v271
        %463 = vmatprep.mubr.f32.mxu0 %v237
        %464 = vmatmul.mubr.f32.gmra.mrb[0].mxu0 %v236
        %v465 = vpop.f32.mrb[0].mxu0
        %v466 = vadd.f32 %v391, %v465
        %v467 = vpop.f32.mrb[0].mxu0
        %468 = vmatprep.mubr.f32.mxu0 %v239
        %469 = vmatmul.mubr.f32.gmra.mrb[0].mxu0 %v238
        %v470 = vpop.f32.mrb[0].mxu0
        %v471 = vadd.f32 %v396, %v470
        %v472 = vpop.f32.mrb[0].mxu0
        %473 = vdwg.mxu0
        %474 = vst [vmem:[%s234] sm:$0xff] %v466
        %475 = vst [vmem:[%s234 + $0x8] sm:$0x1] %v471
        %vm476 = vcmask 1040384
        %v477 = vsel %vm476, %v471, 0.0
        %v478 = vadd.f32 %v466, %v477
        %v479 = vrot.slane %v478, 4
        %v480 = vadd.f32 %v478, %v479
        %v481 = vrot.slane %v480, 2
        %v482 = vadd.f32 %v480, %v481
        %v483 = vrot.slane %v482, 1
        %v484 = vadd.f32 %v482, %v483
        %v485 = vmul.f32 %v466, %v466
        %v486 = vmul.f32 %v471, %v471
        %v487 = vsel %vm476, %v486, 0.0
        %v488 = vadd.f32 %v485, %v487
        %v489 = vrot.slane %v488, 4
        %v490 = vadd.f32 %v488, %v489
        %v491 = vrot.slane %v490, 2
        %v492 = vadd.f32 %v490, %v491
        %v493 = vrot.slane %v492, 1
        %v494 = vadd.f32 %v492, %v493
        %v495 = vsel %vm476, %v484, %v494
        %496 = vst [vmem:[%s216] sm:$0x3] %v495
        %s497 = smul.u32 2, %s24
        %p498 = scmp.lt.s32.totalorder %s23, 1
        %s499 = scalar_select %p498, %s23, 1
        %p500 = scmp.lt.s32.totalorder %s497, 1
        %s501 = scalar_select %p500, %s497, 1
        %s502 = smul.addr %s499, 2
        %s503 = sadd.s32 %s501, %s502
        %s504 = smul.addr %s503, 8
        %s505 = scalar_lea.vmem %s2, %s504
        %s506 = sand.u32 %s118, 1
        %s507 = scalar_lea.sflag [#allocation4], %s506
        %s508 = sand.u32 %s118, 1
        %s509 = smul.addr %s508, 2
        %s510 = scalar_lea.vmem [#allocation5], %s509
        // Predicated region
        $region33: #{tpu_custom_call.1} parent=27 // pred_check
          %p511 = pneg %p100
        $region34: #{tpu_custom_call.1} parent=27 // pred_check_branch
          %513 = sbr.rel (%p511) target = $region36
        $region35: #{tpu_custom_call.1} parent=27 // pred_region
          %s514 = smul.u32 2, %s24
        $region36: #{tpu_custom_call.1} parent=27 // pred_fallthru
          _
        // Predicated region
        $region37: #{tpu_custom_call.1} parent=27 // pred_check
          %p515 = pneg %p128
        $region38: #{tpu_custom_call.1} parent=27 // pred_check_branch
          %517 = sbr.rel (%p515) target = $region40
        $region39: #{tpu_custom_call.1} parent=27 // pred_region
          %s519 = ssub.s32 32, 32
          %520 = vsyncadd %s507, %s519
          %s521 = sadd.s32 %s24, %s23
          %s522 = smul.addr %s521, 32
          %s523 = scalar_lea.hbm %s3, %s522
          %s525 = sshll.u32 %s510, 4
          %s526 = int_to_ptr.vmem [resolvable:$true] %s525
          %528 = dma.vmem_to_hbm [thread:$0]  %s526, 32, %s523, %s507
        $region40: #{tpu_custom_call.1} parent=27 // pred_fallthru
          _
      $region28: #{tpu_custom_call.1} parent=5 // pred_fallthru
        _
      %p529 = scmp.le.s32.totalorder 2, %s14
      // Predicated region
      $region41: #{tpu_custom_call.1} parent=5 // pred_check
        %p530 = pneg %p529
      $region42: #{tpu_custom_call.1} parent=5 // pred_check_branch
        %532 = sbr.rel (%p530) target = $region44
      $region43: #{tpu_custom_call.1} parent=5 // pred_region
        %s533 = ssub.s32 %s14, 2
        // Predicated region
        $region45: #{tpu_custom_call.1} parent=43 // pred_check
          %p534 = pneg %p106
        $region46: #{tpu_custom_call.1} parent=43 // pred_check_branch
          %536 = sbr.rel (%p534) target = $region48
        $region47: #{tpu_custom_call.1} parent=43 // pred_region
          %s537 = smul.u32 2, %s26
          %p538 = scmp.lt.s32.totalorder %s25, 1
          %s539 = scalar_select %p538, %s25, 1
          %p540 = scmp.lt.s32.totalorder %s537, 1
          %s541 = scalar_select %p540, %s537, 1
          %s542 = smul.addr %s539, 2
          %s543 = sadd.s32 %s541, %s542
          %s544 = smul.addr %s543, 8
          %s545 = scalar_lea.vmem %s2, %s544
        $region48: #{tpu_custom_call.1} parent=43 // pred_fallthru
          _
        // Predicated region
        $region49: #{tpu_custom_call.1} parent=43 // pred_check
          %p546 = pneg %p134
        $region50: #{tpu_custom_call.1} parent=43 // pred_check_branch
          %548 = sbr.rel (%p546) target = $region52
        $region51: #{tpu_custom_call.1} parent=43 // pred_region
          %s549 = sand.u32 %s119, 1
          %s550 = scalar_lea.sflag [#allocation4], %s549
          %s551 = sand.u32 %s119, 1
          %s552 = smul.addr %s551, 2
          %s553 = scalar_lea.vmem [#allocation5], %s552
          %554 = dma.done %s550, 32
        $region52: #{tpu_custom_call.1} parent=43 // pred_fallthru
          _
      $region44: #{tpu_custom_call.1} parent=5 // pred_fallthru
        _
    $region6: #{tpu_custom_call.1} parent=1 // loop_footer
      %s18 = sadd.s32 1, %s14
    $region7: #{tpu_custom_call.1} parent=1 // loop_footer_branch
      %13 = sbr.rel target = $region3
    $region8: #{tpu_custom_call.1} parent=1 // loop_exit
      _
    %555 = vsyncpa [#allocation3], 1
    %s556 = scalar_lea.sflag [#allocation3], 1
    %557 = vsyncpa %s556, 1
    %558 = vsyncpa [#allocation4], 1
    %s559 = scalar_lea.sflag [#allocation4], 1
    %560 = vsyncpa %s559, 1

</llo_original>
